<compile_context>
chip_gen: v7x
topology: tpu7x:2x2x1
jax: 0.10.0
libtpu: 0.0.40
codegen_flags: <defaults>
</compile_context>

<pallas_src>
import math

import jax
import jax.numpy as jnp
import numpy as np
from jax import lax
from jax.experimental import pallas as pl
from jax.experimental.pallas import tpu as pltpu


_INV_SQRT2 = 1.0 / math.sqrt(2.0)
_LN_EPS = 1e-12


def _gelu_erf(x):
    # x * 0.5 * (1 + erf(x / sqrt(2)))  -- matches the PyTorch reference exactly
    return x * 0.5 * (1.0 + lax.erf(x * _INV_SQRT2))


def _round_up(a, b):
    return (a + b - 1) // b * b


def overlap_linear_kernel(x_ref, y_ref, wdx_ref, wdy_ref, cst_ref, out_ref):
    # cst: (3, H) packed constants: row0 = dense bias, row1 = ones,
    #      row2 = gamma*wdec - mean(gamma*wdec)   (centered effective decoder weight)
    cst = cst_ref[...]
    bd = cst[0:1, :]                       # (1, H)
    wred = cst[1:3, :]                     # (2, H)
    H = cst_ref.shape[-1]
    inv_h = 1.0 / float(H)

    # dense: h = x @ Wd_x + y @ Wd_y + bd      -> (tm, H), f32 accumulation on MXU
    h = (jnp.dot(x_ref[...], wdx_ref[...], preferred_element_type=jnp.float32)
         + jnp.dot(y_ref[...], wdy_ref[...], preferred_element_type=jnp.float32)
         + bd)

    # exact erf gelu (f32 on VPU/EUP)
    g = _gelu_erf(h)

    # Lane-dense reductions over the hidden axis: contract H so per-row results
    # come out along the lane axis as (2, tm).
    dims = (((1,), (1,)), ((), ()))
    r = lax.dot_general(wred, g, dims, preferred_element_type=jnp.float32)       # (2, tm)
    r2 = lax.dot_general(wred, g * g, dims, preferred_element_type=jnp.float32)  # (2, tm)

    mean = r[0:1, :] * inv_h               # E[g]        per row, (1, tm)
    s_w = r[1:2, :]                        # sum_h (g_h - mean) * (gamma_h*wdec_h), via centered weights
    var = r2[0:1, :] * inv_h - mean * mean # biased variance E[g^2] - E[g]^2
    inv_std = lax.rsqrt(var + _LN_EPS)

    # out = inv_std * s_w  (+ scalar (beta.wdec + bdec), added in the wrapper)
    out_ref[...] = (inv_std * s_w).astype(out_ref.dtype)


def overlap_linear(x, y, params, *, tm=512):
    """x, y: (N, D) float32.  Returns (N, 1) float32 matching the PyTorch module."""
    wd, bd, gamma, beta, wdec, bdec = params
    N, D = x.shape
    H = wd.shape[1]

    # --- fold LayerNorm affine + decoder into one weighted lane reduction -----
    w_eff = (gamma.reshape(H) * wdec.reshape(H)).astype(jnp.float32)   # gamma_h * wdec_h
    w_eff_c = w_eff - jnp.mean(w_eff)                                  # centering absorbs the -mean term
    c = jnp.sum(beta.reshape(H) * wdec.reshape(H)) + bdec.reshape(())  # scalar: beta . wdec + bdec

    # packed constants: [dense bias; ones; centered gamma*wdec]  -> (3, H)
    cst = jnp.concatenate(
        [bd.reshape(1, H).astype(jnp.float32),
         jnp.ones((1, H), jnp.float32),
         w_eff_c.reshape(1, H)], axis=0)

    # split the dense weight so no fuse=concat([x, y]) ever hits HBM
    wdx = wd[:D, :]
    wdy = wd[D:, :]

    # --- row tiling: lane-dense (1, tm) output blocks; pad rows to a multiple --
    tm_eff = _round_up(min(tm, _round_up(N, 128)), 128)
    n_pad = _round_up(N, tm_eff)
    if n_pad != N:
        x = jnp.pad(x, ((0, n_pad - N), (0, 0)))
        y = jnp.pad(y, ((0, n_pad - N), (0, 0)))

    grid = (n_pad // tm_eff,)
    out = pl.pallas_call(
        overlap_linear_kernel,
        out_shape=jax.ShapeDtypeStruct((1, n_pad), jnp.float32),
        grid_spec=pltpu.PrefetchScalarGridSpec(
            num_scalar_prefetch=0,
            grid=grid,
            in_specs=[
                pl.BlockSpec((tm_eff, D), lambda i: (i, 0)),   # x rows
                pl.BlockSpec((tm_eff, D), lambda i: (i, 0)),   # y rows
                pl.BlockSpec((D, H), lambda i: (0, 0)),        # dense weight, x half (in, out)
                pl.BlockSpec((D, H), lambda i: (0, 0)),        # dense weight, y half (in, out)
                pl.BlockSpec((3, H), lambda i: (0, 0)),        # packed [bd; ones; gamma*wdec centered]
            ],
            out_specs=pl.BlockSpec((1, tm_eff), lambda i: (0, i)),  # lane-dense output row
        ),
        compiler_params=pltpu.CompilerParams(
            dimension_semantics=("parallel",)),
    )(x, y, wdx, wdy, cst)

    # slice off row padding, restore (N, 1), add the folded scalar constant
    return out[0, :N].reshape(N, 1) + c


def reference(x, y, params):
    wd, bd, gamma, beta, wdec, bdec = params
    fuse = jnp.concatenate([x, y], axis=-1)
    h = fuse @ wd + bd
    g = _gelu_erf(h)
    mean = jnp.mean(g, axis=-1, keepdims=True)
    var = jnp.mean((g - mean) ** 2, axis=-1, keepdims=True)
    ln = (g - mean) / jnp.sqrt(var + 1e-12) * gamma + beta
    return ln @ wdec + bdec


if __name__ == "__main__":
    # small shapes consistent with the module: input_size=32, hidden_size=64
    batch, seq, input_size, hidden_size = 2, 8, 32, 64
    N = batch * seq

    key = jax.random.PRNGKey(0)
    kx, ky, k1, k2, k3, k4 = jax.random.split(key, 6)

    x = jax.random.normal(kx, (batch, seq, input_size), jnp.float32)
    y = jax.random.normal(ky, (batch, seq, input_size), jnp.float32)

    # deterministic parameter init (Linear weights stored transposed: (in, out))
    wd = jax.random.normal(k1, (2 * input_size, hidden_size), jnp.float32) * 0.02
    bd = jax.random.normal(k2, (1, hidden_size), jnp.float32) * 0.02
    gamma = jnp.ones((1, hidden_size), jnp.float32)
    beta = jnp.zeros((1, hidden_size), jnp.float32)
    wdec = jax.random.normal(k3, (hidden_size, 1), jnp.float32) * 0.02
    bdec = jax.random.normal(k4, (1, 1), jnp.float32) * 0.02
    params = (wd, bd, gamma, beta, wdec, bdec)

    x2 = x.reshape(N, input_size)
    y2 = y.reshape(N, input_size)

    out = overlap_linear(x2, y2, params)
    out = jax.block_until_ready(out)

    ref = reference(x2, y2, params)
    np.testing.assert_allclose(np.asarray(out), np.asarray(ref), rtol=1e-5, atol=1e-5)

    # reshape back to (batch, seq, 1) like the PyTorch module would return
    _ = out.reshape(batch, seq, 1)
    print("KERNEL_OK")
</pallas_src>

<mosaic_0001>
module attributes {stable_mosaic.version = 11 : i64} {
  func.func @overlap_linear_kernel(%arg0: i32, %arg1: memref<128x32xf32, #tpu.memory_space<vmem>>, %arg2: memref<128x32xf32, #tpu.memory_space<vmem>>, %arg3: memref<32x64xf32, #tpu.memory_space<vmem>>, %arg4: memref<32x64xf32, #tpu.memory_space<vmem>>, %arg5: memref<3x64xf32, #tpu.memory_space<vmem>>, %arg6: memref<1x128xf32, #tpu.memory_space<vmem>>) attributes {dimension_semantics = [#tpu.dimension_semantics<parallel>], iteration_bounds = array<i64: 1>, scalar_prefetch = 0 : i64, scratch_operands = 0 : i64, tpu.core_type = #tpu.core_type<tc>, window_params = [{transform_indices = @transform_0, window_bounds = array<i64: 128, 32>}, {transform_indices = @transform_1, window_bounds = array<i64: 128, 32>}, {pipeline_mode = #tpu.pipeline_mode<synchronous>, transform_indices = @transform_2, window_bounds = array<i64: 32, 64>}, {pipeline_mode = #tpu.pipeline_mode<synchronous>, transform_indices = @transform_3, window_bounds = array<i64: 32, 64>}, {pipeline_mode = #tpu.pipeline_mode<synchronous>, transform_indices = @transform_4, window_bounds = array<i64: 3, 64>}, {transform_indices = @transform_5, window_bounds = array<i64: 1, 128>}]} {
    %c0 = arith.constant 0 : index
    %c0_0 = arith.constant 0 : index
    %0 = vector.load %arg5[%c0, %c0_0] : memref<3x64xf32, #tpu.memory_space<vmem>>, vector<3x64xf32>
    %1 = vector.extract_strided_slice %0 {offsets = [0, 0], sizes = [1, 64], strides = [1, 1]} : vector<3x64xf32> to vector<1x64xf32>
    %2 = vector.extract_strided_slice %0 {offsets = [1, 0], sizes = [2, 64], strides = [1, 1]} : vector<3x64xf32> to vector<2x64xf32>
    %c0_1 = arith.constant 0 : index
    %c0_2 = arith.constant 0 : index
    %3 = vector.load %arg1[%c0_1, %c0_2] : memref<128x32xf32, #tpu.memory_space<vmem>>, vector<128x32xf32>
    %c0_3 = arith.constant 0 : index
    %c0_4 = arith.constant 0 : index
    %4 = vector.load %arg3[%c0_3, %c0_4] : memref<32x64xf32, #tpu.memory_space<vmem>>, vector<32x64xf32>
    %cst = arith.constant dense<0.000000e+00> : vector<128x64xf32>
    %5 = tpu.matmul %3, %4, %cst {dimension_numbers = #tpu.dot_dimension_numbers<[1], [0], [0], [1], [0, 0, 1, 1], [], []>} : vector<128x32xf32>, vector<32x64xf32>, vector<128x64xf32> -> vector<128x64xf32>
    %c0_5 = arith.constant 0 : index
    %c0_6 = arith.constant 0 : index
    %6 = vector.load %arg2[%c0_5, %c0_6] : memref<128x32xf32, #tpu.memory_space<vmem>>, vector<128x32xf32>
    %c0_7 = arith.constant 0 : index
    %c0_8 = arith.constant 0 : index
    %7 = vector.load %arg4[%c0_7, %c0_8] : memref<32x64xf32, #tpu.memory_space<vmem>>, vector<32x64xf32>
    %cst_9 = arith.constant dense<0.000000e+00> : vector<128x64xf32>
    %8 = tpu.matmul %6, %7, %cst_9 {dimension_numbers = #tpu.dot_dimension_numbers<[1], [0], [0], [1], [0, 0, 1, 1], [], []>} : vector<128x32xf32>, vector<32x64xf32>, vector<128x64xf32> -> vector<128x64xf32>
    %9 = arith.addf %5, %8 : vector<128x64xf32>
    %10 = vector.broadcast %1 : vector<1x64xf32> to vector<128x64xf32>
    %11 = arith.addf %9, %10 : vector<128x64xf32>
    %cst_10 = arith.constant 5.000000e-01 : f32
    %12 = vector.broadcast %cst_10 : f32 to vector<128x64xf32>
    %13 = arith.mulf %11, %12 : vector<128x64xf32>
    %cst_11 = arith.constant 0.707106769 : f32
    %14 = vector.broadcast %cst_11 : f32 to vector<128x64xf32>
    %15 = arith.mulf %11, %14 : vector<128x64xf32>
    %16 = math.erf %15 : vector<128x64xf32>
    %cst_12 = arith.constant 1.000000e+00 : f32
    %17 = vector.broadcast %cst_12 : f32 to vector<128x64xf32>
    %18 = arith.addf %17, %16 : vector<128x64xf32>
    %19 = arith.mulf %13, %18 : vector<128x64xf32>
    %cst_13 = arith.constant dense<0.000000e+00> : vector<2x128xf32>
    %20 = tpu.matmul %2, %19, %cst_13 {dimension_numbers = #tpu.dot_dimension_numbers<[1], [1], [0], [0], [0, 0, 1, 0], [], []>} : vector<2x64xf32>, vector<128x64xf32>, vector<2x128xf32> -> vector<2x128xf32>
    %21 = arith.mulf %19, %19 : vector<128x64xf32>
    %cst_14 = arith.constant dense<0.000000e+00> : vector<2x128xf32>
    %22 = tpu.matmul %2, %21, %cst_14 {dimension_numbers = #tpu.dot_dimension_numbers<[1], [1], [0], [0], [0, 0, 1, 0], [], []>} : vector<2x64xf32>, vector<128x64xf32>, vector<2x128xf32> -> vector<2x128xf32>
    %23 = vector.extract_strided_slice %20 {offsets = [0, 0], sizes = [1, 128], strides = [1, 1]} : vector<2x128xf32> to vector<1x128xf32>
    %cst_15 = arith.constant 1.562500e-02 : f32
    %24 = vector.broadcast %cst_15 : f32 to vector<1x128xf32>
    %25 = arith.mulf %23, %24 : vector<1x128xf32>
    %26 = vector.extract_strided_slice %20 {offsets = [1, 0], sizes = [1, 128], strides = [1, 1]} : vector<2x128xf32> to vector<1x128xf32>
    %27 = vector.extract_strided_slice %22 {offsets = [0, 0], sizes = [1, 128], strides = [1, 1]} : vector<2x128xf32> to vector<1x128xf32>
    %cst_16 = arith.constant 1.562500e-02 : f32
    %28 = vector.broadcast %cst_16 : f32 to vector<1x128xf32>
    %29 = arith.mulf %27, %28 : vector<1x128xf32>
    %30 = arith.mulf %25, %25 : vector<1x128xf32>
    %31 = arith.subf %29, %30 : vector<1x128xf32>
    %cst_17 = arith.constant 9.99999996E-13 : f32
    %32 = vector.broadcast %cst_17 : f32 to vector<1x128xf32>
    %33 = arith.addf %31, %32 : vector<1x128xf32>
    %34 = math.rsqrt %33 : vector<1x128xf32>
    %35 = arith.mulf %34, %26 : vector<1x128xf32>
    %c0_18 = arith.constant 0 : index
    %c0_19 = arith.constant 0 : index
    %36 = vector.load %arg6[%c0_18, %c0_19] : memref<1x128xf32, #tpu.memory_space<vmem>>, vector<1x128xf32>
    tpu.vector_store %arg6[%c0_18, %c0_19], %35 {strides = array<i32>} : memref<1x128xf32, #tpu.memory_space<vmem>>, vector<1x128xf32>,
    return
  }
  func.func @transform_0(%arg0: i32) -> (i32, i32) {
    %c0_i32 = arith.constant 0 : i32
    %c0_i32_0 = arith.constant 0 : i32
    return %arg0, %c0_i32 : i32, i32
  }
  func.func @transform_1(%arg0: i32) -> (i32, i32) {
    %c0_i32 = arith.constant 0 : i32
    %c0_i32_0 = arith.constant 0 : i32
    return %arg0, %c0_i32 : i32, i32
  }
  func.func @transform_2(%arg0: i32) -> (i32, i32) {
    %c0_i32 = arith.constant 0 : i32
    %c0_i32_0 = arith.constant 0 : i32
    %c0_i32_1 = arith.constant 0 : i32
    return %c0_i32, %c0_i32_0 : i32, i32
  }
  func.func @transform_3(%arg0: i32) -> (i32, i32) {
    %c0_i32 = arith.constant 0 : i32
    %c0_i32_0 = arith.constant 0 : i32
    %c0_i32_1 = arith.constant 0 : i32
    return %c0_i32, %c0_i32_0 : i32, i32
  }
  func.func @transform_4(%arg0: i32) -> (i32, i32) {
    %c0_i32 = arith.constant 0 : i32
    %c0_i32_0 = arith.constant 0 : i32
    %c0_i32_1 = arith.constant 0 : i32
    return %c0_i32, %c0_i32_0 : i32, i32
  }
  func.func @transform_5(%arg0: i32) -> (i32, i32) {
    %c0_i32 = arith.constant 0 : i32
    %c0_i32_0 = arith.constant 0 : i32
    return %c0_i32, %arg0 : i32, i32
  }
}

</mosaic_0001>

<llo_original>
// kernel: tpu_custom_call.1
$region0: #{tpu_custom_call.1}
  #allocation0 [shape = 'u32[]', space=smem, size = 0x4, offset = 0x4, fixed_abs, tag = 'smem constant byte address 0x4 - core index']
  #allocation1 [shape = 'u32[144,128]{1,0:T(1,128)}', space=vmem, size = 0x12000, scoped, tag = 'internal scratch']
  %s0 = inlined_call_operand.vmem [shape: f32[128,32], index: 0, kind: input, shape index: {}]
  %s1 = inlined_call_operand.vmem [shape: f32[128,32], index: 1, kind: input, shape index: {}]
  %s2 = inlined_call_operand.vmem [shape: f32[32,64], index: 2, kind: input, shape index: {}]
  %s3 = inlined_call_operand.vmem [shape: f32[32,64], index: 3, kind: input, shape index: {}]
  %s4 = inlined_call_operand.vmem [shape: f32[3,64], index: 4, kind: input, shape index: {}]
  %s5 = inlined_call_operand.hbm [shape: f32[1,128], index: 5, kind: output, shape index: {}]
  %s6 = sld [smem:[#allocation0]]
  $region30: #{tpu_custom_call.1} parent=0
    _
  %s8 = ssub.s32 1, %s6
  %s9 = scalar_select 0, %s8, %s6
  $region1: #{tpu_custom_call.1} parent=0
    #allocation2 [shape = 'u8[512]{0}', space=vmem, size = 0x400, scoped, tag = 'output window, operand 0, single buffered']
    #allocation3 [shape = 's32[1]{0}', space=sflag, size = 0x4, scoped, tag = 'scoped memory for tpu_custom_call.1']
    %10 = vsyncpa [#allocation3], 0
    // Predicated region
    $region2: #{tpu_custom_call.1} parent=1 // pred_check
      _
    $region3: #{tpu_custom_call.1} parent=1 // pred_check_branch
      %12 = sbr.rel (0) target = $region5
    $region4: #{tpu_custom_call.1} parent=1 // pred_region
      _
    $region5: #{tpu_custom_call.1} parent=1 // pred_fallthru
      _
    // Predicated region
    $region6: #{tpu_custom_call.1} parent=1 // pred_check
      _
    $region7: #{tpu_custom_call.1} parent=1 // pred_check_branch
      %14 = sbr.rel (0) target = $region9
    $region8: #{tpu_custom_call.1} parent=1 // pred_region
      _
    $region9: #{tpu_custom_call.1} parent=1 // pred_fallthru
      _
    // Predicated region
    $region10: #{tpu_custom_call.1} parent=1 // pred_check
      _
    $region11: #{tpu_custom_call.1} parent=1 // pred_check_branch
      %16 = sbr.rel (0) target = $region13
    $region12: #{tpu_custom_call.1} parent=1 // pred_region
      _
    $region13: #{tpu_custom_call.1} parent=1 // pred_fallthru
      _
    // Predicated region
    $region14: #{tpu_custom_call.1} parent=1 // pred_check
      _
    $region15: #{tpu_custom_call.1} parent=1 // pred_check_branch
      %18 = sbr.rel (0) target = $region17
    $region16: #{tpu_custom_call.1} parent=1 // pred_region
      _
    $region17: #{tpu_custom_call.1} parent=1 // pred_fallthru
      _
    // Predicated region
    $region18: #{tpu_custom_call.1} parent=1 // pred_check
      _
    $region19: #{tpu_custom_call.1} parent=1 // pred_check_branch
      %20 = sbr.rel (0) target = $region21
    $region20: #{tpu_custom_call.1} parent=1 // pred_region
      _
    $region21: #{tpu_custom_call.1} parent=1 // pred_fallthru
      _
    %v21 = vld [vmem:[%s4] sm:$0x7]
    %v22 = vld [vmem:[%s0] sm:$0xff]
    %v23 = vld [vmem:[%s0 + $0x8] sm:$0xff]
    %v24 = vld [vmem:[%s0 + $0x10] sm:$0xff]
    %v25 = vld [vmem:[%s0 + $0x18] sm:$0xff]
    %v26 = vld [vmem:[%s0 + $0x20] sm:$0xff]
    %v27 = vld [vmem:[%s0 + $0x28] sm:$0xff]
    %v28 = vld [vmem:[%s0 + $0x30] sm:$0xff]
    %v29 = vld [vmem:[%s0 + $0x38] sm:$0xff]
    %v30 = vld [vmem:[%s0 + $0x40] sm:$0xff]
    %v31 = vld [vmem:[%s0 + $0x48] sm:$0xff]
    %v32 = vld [vmem:[%s0 + $0x50] sm:$0xff]
    %v33 = vld [vmem:[%s0 + $0x58] sm:$0xff]
    %v34 = vld [vmem:[%s0 + $0x60] sm:$0xff]
    %v35 = vld [vmem:[%s0 + $0x68] sm:$0xff]
    %v36 = vld [vmem:[%s0 + $0x70] sm:$0xff]
    %v37 = vld [vmem:[%s0 + $0x78] sm:$0xff]
    %v38 = vld [vmem:[%s2] sm:$0xff]
    %v39 = vld [vmem:[%s2 + $0x8] sm:$0xff]
    %v40 = vld [vmem:[%s2 + $0x10] sm:$0xff]
    %v41 = vld [vmem:[%s2 + $0x18] sm:$0xff]
    %v42 = vld [vmem:[%s1] sm:$0xff]
    %v43 = vld [vmem:[%s1 + $0x8] sm:$0xff]
    %v44 = vld [vmem:[%s1 + $0x10] sm:$0xff]
    %v45 = vld [vmem:[%s1 + $0x18] sm:$0xff]
    %v46 = vld [vmem:[%s1 + $0x20] sm:$0xff]
    %v47 = vld [vmem:[%s1 + $0x28] sm:$0xff]
    %v48 = vld [vmem:[%s1 + $0x30] sm:$0xff]
    %v49 = vld [vmem:[%s1 + $0x38] sm:$0xff]
    %v50 = vld [vmem:[%s1 + $0x40] sm:$0xff]
    %v51 = vld [vmem:[%s1 + $0x48] sm:$0xff]
    %v52 = vld [vmem:[%s1 + $0x50] sm:$0xff]
    %v53 = vld [vmem:[%s1 + $0x58] sm:$0xff]
    %v54 = vld [vmem:[%s1 + $0x60] sm:$0xff]
    %v55 = vld [vmem:[%s1 + $0x68] sm:$0xff]
    %v56 = vld [vmem:[%s1 + $0x70] sm:$0xff]
    %v57 = vld [vmem:[%s1 + $0x78] sm:$0xff]
    %v58 = vld [vmem:[%s3] sm:$0xff]
    %v59 = vld [vmem:[%s3 + $0x8] sm:$0xff]
    %v60 = vld [vmem:[%s3 + $0x10] sm:$0xff]
    %v61 = vld [vmem:[%s3 + $0x18] sm:$0xff]
    %vm62 = vcmask 261120
    %v64 = vsel %vm62, %v42, 0
    %v67 = vsel %vm62, %v43, 0
    %v70 = vsel %vm62, %v44, 0
    %v73 = vsel %vm62, %v45, 0
    %v76 = vsel %vm62, %v46, 0
    %v79 = vsel %vm62, %v47, 0
    %v82 = vsel %vm62, %v48, 0
    %v85 = vsel %vm62, %v49, 0
    %v88 = vsel %vm62, %v50, 0
    %v91 = vsel %vm62, %v51, 0
    %v94 = vsel %vm62, %v52, 0
    %v97 = vsel %vm62, %v53, 0
    %v100 = vsel %vm62, %v54, 0
    %v103 = vsel %vm62, %v55, 0
    %v106 = vsel %vm62, %v56, 0
    %v109 = vsel %vm62, %v57, 0
    %111 = vmatprep.subr.mxu0 0.0
    %112 = vmatpush1.msra.mxu0 %v58
    %113 = vmatprep.subr.mxu0 0.0
    %114 = vmatpush1.msra.mxu0 %v59
    %115 = vmatprep.subr.mxu0 0.0
    %116 = vmatpush1.msra.mxu0 %v60
    %117 = vmatprep.subr.mxu0 0.0
    %118 = vmatpush1.msra.mxu0 %v61
    %119 = vmatprep.subr.mxu0 0.0
    %120 = vmatpush1.msra.mxu0 0.0
    %121 = vmatprep.subr.mxu0 0.0
    %122 = vmatpush1.msra.mxu0 0.0
    %123 = vmatprep.subr.mxu0 0.0
    %124 = vmatpush1.msra.mxu0 0.0
    %125 = vmatprep.subr.mxu0 0.0
    %126 = vmatpush1.msra.mxu0 0.0
    %127 = vmatprep.subr.mxu0 0.0
    %128 = vmatpush1.msra.mxu0 0.0
    %129 = vmatprep.subr.mxu0 0.0
    %130 = vmatpush1.msra.mxu0 0.0
    %131 = vmatprep.subr.mxu0 0.0
    %132 = vmatpush1.msra.mxu0 0.0
    %133 = vmatprep.subr.mxu0 0.0
    %134 = vmatpush1.msra.mxu0 0.0
    %135 = vmatprep.subr.mxu0 0.0
    %136 = vmatpush1.msra.mxu0 0.0
    %137 = vmatprep.subr.mxu0 0.0
    %138 = vmatpush1.msra.mxu0 0.0
    %139 = vmatprep.subr.mxu0 0.0
    %140 = vmatpush1.msra.mxu0 0.0
    %141 = vmatprep.subr.mxu0 0.0
    %142 = vmatpush1.msra.mxu0 0.0
    %143 = vmatprep.subr.mxu0 0.0
    %144 = vmatpush1.msra.mxu0 0.0
    %145 = vmatprep.subr.mxu0 0.0
    %146 = vmatpush1.msra.mxu0 0.0
    %147 = vmatprep.subr.mxu0 0.0
    %148 = vmatpush1.msra.mxu0 0.0
    %149 = vmatprep.subr.mxu0 0.0
    %150 = vmatpush1.msra.mxu0 0.0
    %151 = vmatprep.subr.mxu0 0.0
    %152 = vmatpush1.msra.mxu0 0.0
    %153 = vmatprep.subr.mxu0 0.0
    %154 = vmatpush1.msra.mxu0 0.0
    %155 = vmatprep.subr.mxu0 0.0
    %156 = vmatpush1.msra.mxu0 0.0
    %157 = vmatprep.subr.mxu0 0.0
    %158 = vmatpush1.msra.mxu0 0.0
    %159 = vmatprep.subr.mxu0 0.0
    %160 = vmatpush1.msra.mxu0 0.0
    %161 = vmatprep.subr.mxu0 0.0
    %162 = vmatpush1.msra.mxu0 0.0
    %163 = vmatprep.subr.mxu0 0.0
    %164 = vmatpush1.msra.mxu0 0.0
    %165 = vmatprep.subr.mxu0 0.0
    %166 = vmatpush1.msra.mxu0 0.0
    %167 = vmatprep.subr.mxu0 0.0
    %168 = vmatpush1.msra.mxu0 0.0
    %169 = vmatprep.subr.mxu0 0.0
    %170 = vmatpush1.msra.mxu0 0.0
    %171 = vmatprep.subr.mxu0 0.0
    %172 = vmatpush1.msra.mxu0 0.0
    %173 = vmatprep.subr.mxu0 0.0
    %174 = vmatpush1.msra.mxu0 0.0
    %175 = vmatprep.mubr.f32.mxu0 0.0
    %176 = vmatmul.mubr.f32.gmra.mrb[0].mxu0 %v64
    %v177 = vpop.f32.mrb[0].mxu0
    %v178 = vadd.f32 0.0, %v177
    %v179 = vpop.f32.mrb[0].mxu0
    %180 = vmatprep.mubr.f32.mxu0 0.0
    %181 = vmatmul.mubr.f32.gmra.mrb[0].mxu0 %v67
    %v182 = vpop.f32.mrb[0].mxu0
    %v183 = vadd.f32 0.0, %v182
    %v184 = vpop.f32.mrb[0].mxu0
    %185 = vmatprep.mubr.f32.mxu0 0.0
    %186 = vmatmul.mubr.f32.gmra.mrb[0].mxu0 %v70
    %v187 = vpop.f32.mrb[0].mxu0
    %v188 = vadd.f32 0.0, %v187
    %v189 = vpop.f32.mrb[0].mxu0
    %190 = vmatprep.mubr.f32.mxu0 0.0
    %191 = vmatmul.mubr.f32.gmra.mrb[0].mxu0 %v73
    %v192 = vpop.f32.mrb[0].mxu0
    %v193 = vadd.f32 0.0, %v192
    %v194 = vpop.f32.mrb[0].mxu0
    %195 = vmatprep.mubr.f32.mxu0 0.0
    %196 = vmatmul.mubr.f32.gmra.mrb[0].mxu0 %v76
    %v197 = vpop.f32.mrb[0].mxu0
    %v198 = vadd.f32 0.0, %v197
    %v199 = vpop.f32.mrb[0].mxu0
    %200 = vmatprep.mubr.f32.mxu0 0.0
    %201 = vmatmul.mubr.f32.gmra.mrb[0].mxu0 %v79
    %v202 = vpop.f32.mrb[0].mxu0
    %v203 = vadd.f32 0.0, %v202
    %v204 = vpop.f32.mrb[0].mxu0
    %205 = vmatprep.mubr.f32.mxu0 0.0
    %206 = vmatmul.mubr.f32.gmra.mrb[0].mxu0 %v82
    %v207 = vpop.f32.mrb[0].mxu0
    %v208 = vadd.f32 0.0, %v207
    %v209 = vpop.f32.mrb[0].mxu0
    %210 = vmatprep.mubr.f32.mxu0 0.0
    %211 = vmatmul.mubr.f32.gmra.mrb[0].mxu0 %v85
    %v212 = vpop.f32.mrb[0].mxu0
    %v213 = vadd.f32 0.0, %v212
    %v214 = vpop.f32.mrb[0].mxu0
    %215 = vmatprep.mubr.f32.mxu0 0.0
    %216 = vmatmul.mubr.f32.gmra.mrb[0].mxu0 %v88
    %v217 = vpop.f32.mrb[0].mxu0
    %v218 = vadd.f32 0.0, %v217
    %v219 = vpop.f32.mrb[0].mxu0
    %220 = vmatprep.mubr.f32.mxu0 0.0
    %221 = vmatmul.mubr.f32.gmra.mrb[0].mxu0 %v91
    %v222 = vpop.f32.mrb[0].mxu0
    %v223 = vadd.f32 0.0, %v222
    %v224 = vpop.f32.mrb[0].mxu0
    %225 = vmatprep.mubr.f32.mxu0 0.0
    %226 = vmatmul.mubr.f32.gmra.mrb[0].mxu0 %v94
    %v227 = vpop.f32.mrb[0].mxu0
    %v228 = vadd.f32 0.0, %v227
    %v229 = vpop.f32.mrb[0].mxu0
    %230 = vmatprep.mubr.f32.mxu0 0.0
    %231 = vmatmul.mubr.f32.gmra.mrb[0].mxu0 %v97
    %v232 = vpop.f32.mrb[0].mxu0
    %v233 = vadd.f32 0.0, %v232
    %v234 = vpop.f32.mrb[0].mxu0
    %235 = vmatprep.mubr.f32.mxu0 0.0
    %236 = vmatmul.mubr.f32.gmra.mrb[0].mxu0 %v100
    %v237 = vpop.f32.mrb[0].mxu0
    %v238 = vadd.f32 0.0, %v237
    %v239 = vpop.f32.mrb[0].mxu0
    %240 = vmatprep.mubr.f32.mxu0 0.0
    %241 = vmatmul.mubr.f32.gmra.mrb[0].mxu0 %v103
    %v242 = vpop.f32.mrb[0].mxu0
    %v243 = vadd.f32 0.0, %v242
    %v244 = vpop.f32.mrb[0].mxu0
    %245 = vmatprep.mubr.f32.mxu0 0.0
    %246 = vmatmul.mubr.f32.gmra.mrb[0].mxu0 %v106
    %v247 = vpop.f32.mrb[0].mxu0
    %v248 = vadd.f32 0.0, %v247
    %v249 = vpop.f32.mrb[0].mxu0
    %250 = vmatprep.mubr.f32.mxu0 0.0
    %251 = vmatmul.mubr.f32.gmra.mrb[0].mxu0 %v109
    %v252 = vpop.f32.mrb[0].mxu0
    %v253 = vadd.f32 0.0, %v252
    %v254 = vpop.f32.mrb[0].mxu0
    %255 = vdwg.mxu0
    %v257 = vsel %vm62, %v22, 0
    %v260 = vsel %vm62, %v23, 0
    %v263 = vsel %vm62, %v24, 0
    %v266 = vsel %vm62, %v25, 0
    %v269 = vsel %vm62, %v26, 0
    %v272 = vsel %vm62, %v27, 0
    %v275 = vsel %vm62, %v28, 0
    %v278 = vsel %vm62, %v29, 0
    %v281 = vsel %vm62, %v30, 0
    %v284 = vsel %vm62, %v31, 0
    %v287 = vsel %vm62, %v32, 0
    %v290 = vsel %vm62, %v33, 0
    %v293 = vsel %vm62, %v34, 0
    %v296 = vsel %vm62, %v35, 0
    %v299 = vsel %vm62, %v36, 0
    %v302 = vsel %vm62, %v37, 0
    %304 = vmatprep.subr.mxu0 0.0
    %305 = vmatpush1.msra.mxu0 %v38
    %306 = vmatprep.subr.mxu0 0.0
    %307 = vmatpush1.msra.mxu0 %v39
    %308 = vmatprep.subr.mxu0 0.0
    %309 = vmatpush1.msra.mxu0 %v40
    %310 = vmatprep.subr.mxu0 0.0
    %311 = vmatpush1.msra.mxu0 %v41
    %312 = vmatprep.subr.mxu0 0.0
    %313 = vmatpush1.msra.mxu0 0.0
    %314 = vmatprep.subr.mxu0 0.0
    %315 = vmatpush1.msra.mxu0 0.0
    %316 = vmatprep.subr.mxu0 0.0
    %317 = vmatpush1.msra.mxu0 0.0
    %318 = vmatprep.subr.mxu0 0.0
    %319 = vmatpush1.msra.mxu0 0.0
    %320 = vmatprep.subr.mxu0 0.0
    %321 = vmatpush1.msra.mxu0 0.0
    %322 = vmatprep.subr.mxu0 0.0
    %323 = vmatpush1.msra.mxu0 0.0
    %324 = vmatprep.subr.mxu0 0.0
    %325 = vmatpush1.msra.mxu0 0.0
    %326 = vmatprep.subr.mxu0 0.0
    %327 = vmatpush1.msra.mxu0 0.0
    %328 = vmatprep.subr.mxu0 0.0
    %329 = vmatpush1.msra.mxu0 0.0
    %330 = vmatprep.subr.mxu0 0.0
    %331 = vmatpush1.msra.mxu0 0.0
    %332 = vmatprep.subr.mxu0 0.0
    %333 = vmatpush1.msra.mxu0 0.0
    %334 = vmatprep.subr.mxu0 0.0
    %335 = vmatpush1.msra.mxu0 0.0
    %336 = vmatprep.subr.mxu0 0.0
    %337 = vmatpush1.msra.mxu0 0.0
    %338 = vmatprep.subr.mxu0 0.0
    %339 = vmatpush1.msra.mxu0 0.0
    %340 = vmatprep.subr.mxu0 0.0
    %341 = vmatpush1.msra.mxu0 0.0
    %342 = vmatprep.subr.mxu0 0.0
    %343 = vmatpush1.msra.mxu0 0.0
    %344 = vmatprep.subr.mxu0 0.0
    %345 = vmatpush1.msra.mxu0 0.0
    %346 = vmatprep.subr.mxu0 0.0
    %347 = vmatpush1.msra.mxu0 0.0
    %348 = vmatprep.subr.mxu0 0.0
    %349 = vmatpush1.msra.mxu0 0.0
    %350 = vmatprep.subr.mxu0 0.0
    %351 = vmatpush1.msra.mxu0 0.0
    %352 = vmatprep.subr.mxu0 0.0
    %353 = vmatpush1.msra.mxu0 0.0
    %354 = vmatprep.subr.mxu0 0.0
    %355 = vmatpush1.msra.mxu0 0.0
    %356 = vmatprep.subr.mxu0 0.0
    %357 = vmatpush1.msra.mxu0 0.0
    %358 = vmatprep.subr.mxu0 0.0
    %359 = vmatpush1.msra.mxu0 0.0
    %360 = vmatprep.subr.mxu0 0.0
    %361 = vmatpush1.msra.mxu0 0.0
    %362 = vmatprep.subr.mxu0 0.0
    %363 = vmatpush1.msra.mxu0 0.0
    %364 = vmatprep.subr.mxu0 0.0
    %365 = vmatpush1.msra.mxu0 0.0
    %366 = vmatprep.subr.mxu0 0.0
    %367 = vmatpush1.msra.mxu0 0.0
    %368 = vmatprep.mubr.f32.mxu0 0.0
    %369 = vmatmul.mubr.f32.gmra.mrb[0].mxu0 %v257
    %v370 = vpop.f32.mrb[0].mxu0
    %v371 = vadd.f32 %v178, %v370
    %v372 = vpop.f32.mrb[0].mxu0
    %373 = vmatprep.mubr.f32.mxu0 0.0
    %374 = vmatmul.mubr.f32.gmra.mrb[0].mxu0 %v260
    %v375 = vpop.f32.mrb[0].mxu0
    %v376 = vadd.f32 %v183, %v375
    %v377 = vpop.f32.mrb[0].mxu0
    %378 = vmatprep.mubr.f32.mxu0 0.0
    %379 = vmatmul.mubr.f32.gmra.mrb[0].mxu0 %v263
    %v380 = vpop.f32.mrb[0].mxu0
    %v381 = vadd.f32 %v188, %v380
    %v382 = vpop.f32.mrb[0].mxu0
    %383 = vmatprep.mubr.f32.mxu0 0.0
    %384 = vmatmul.mubr.f32.gmra.mrb[0].mxu0 %v266
    %v385 = vpop.f32.mrb[0].mxu0
    %v386 = vadd.f32 %v193, %v385
    %v387 = vpop.f32.mrb[0].mxu0
    %388 = vmatprep.mubr.f32.mxu0 0.0
    %389 = vmatmul.mubr.f32.gmra.mrb[0].mxu0 %v269
    %v390 = vpop.f32.mrb[0].mxu0
    %v391 = vadd.f32 %v198, %v390
    %v392 = vpop.f32.mrb[0].mxu0
    %393 = vmatprep.mubr.f32.mxu0 0.0
    %394 = vmatmul.mubr.f32.gmra.mrb[0].mxu0 %v272
    %v395 = vpop.f32.mrb[0].mxu0
    %v396 = vadd.f32 %v203, %v395
    %v397 = vpop.f32.mrb[0].mxu0
    %398 = vmatprep.mubr.f32.mxu0 0.0
    %399 = vmatmul.mubr.f32.gmra.mrb[0].mxu0 %v275
    %v400 = vpop.f32.mrb[0].mxu0
    %v401 = vadd.f32 %v208, %v400
    %v402 = vpop.f32.mrb[0].mxu0
    %403 = vmatprep.mubr.f32.mxu0 0.0
    %404 = vmatmul.mubr.f32.gmra.mrb[0].mxu0 %v278
    %v405 = vpop.f32.mrb[0].mxu0
    %v406 = vadd.f32 %v213, %v405
    %v407 = vpop.f32.mrb[0].mxu0
    %408 = vmatprep.mubr.f32.mxu0 0.0
    %409 = vmatmul.mubr.f32.gmra.mrb[0].mxu0 %v281
    %v410 = vpop.f32.mrb[0].mxu0
    %v411 = vadd.f32 %v218, %v410
    %v412 = vpop.f32.mrb[0].mxu0
    %413 = vmatprep.mubr.f32.mxu0 0.0
    %414 = vmatmul.mubr.f32.gmra.mrb[0].mxu0 %v284
    %v415 = vpop.f32.mrb[0].mxu0
    %v416 = vadd.f32 %v223, %v415
    %v417 = vpop.f32.mrb[0].mxu0
    %418 = vmatprep.mubr.f32.mxu0 0.0
    %419 = vmatmul.mubr.f32.gmra.mrb[0].mxu0 %v287
    %v420 = vpop.f32.mrb[0].mxu0
    %v421 = vadd.f32 %v228, %v420
    %v422 = vpop.f32.mrb[0].mxu0
    %423 = vmatprep.mubr.f32.mxu0 0.0
    %424 = vmatmul.mubr.f32.gmra.mrb[0].mxu0 %v290
    %v425 = vpop.f32.mrb[0].mxu0
    %v426 = vadd.f32 %v233, %v425
    %v427 = vpop.f32.mrb[0].mxu0
    %428 = vmatprep.mubr.f32.mxu0 0.0
    %429 = vmatmul.mubr.f32.gmra.mrb[0].mxu0 %v293
    %v430 = vpop.f32.mrb[0].mxu0
    %v431 = vadd.f32 %v238, %v430
    %v432 = vpop.f32.mrb[0].mxu0
    %433 = vmatprep.mubr.f32.mxu0 0.0
    %434 = vmatmul.mubr.f32.gmra.mrb[0].mxu0 %v296
    %v435 = vpop.f32.mrb[0].mxu0
    %v436 = vadd.f32 %v243, %v435
    %v437 = vpop.f32.mrb[0].mxu0
    %438 = vmatprep.mubr.f32.mxu0 0.0
    %439 = vmatmul.mubr.f32.gmra.mrb[0].mxu0 %v299
    %v440 = vpop.f32.mrb[0].mxu0
    %v441 = vadd.f32 %v248, %v440
    %v442 = vpop.f32.mrb[0].mxu0
    %443 = vmatprep.mubr.f32.mxu0 0.0
    %444 = vmatmul.mubr.f32.gmra.mrb[0].mxu0 %v302
    %v445 = vpop.f32.mrb[0].mxu0
    %v446 = vadd.f32 %v253, %v445
    %v447 = vpop.f32.mrb[0].mxu0
    %448 = vdwg.mxu0
    %v449 = vlaneseq
    %v450 = vshrl.u32 %v449, 7
    %v451 = vsub.s32 0, %v450
    %v452 = vrot.slane %v21, %v451
    %v453 = vadd.f32 %v371, %v452
    %v454 = vadd.f32 %v376, %v452
    %v455 = vadd.f32 %v381, %v452
    %v456 = vadd.f32 %v386, %v452
    %v457 = vadd.f32 %v391, %v452
    %v458 = vadd.f32 %v396, %v452
    %v459 = vadd.f32 %v401, %v452
    %v460 = vadd.f32 %v406, %v452
    %v461 = vadd.f32 %v411, %v452
    %v462 = vadd.f32 %v416, %v452
    %v463 = vadd.f32 %v421, %v452
    %v464 = vadd.f32 %v426, %v452
    %v465 = vadd.f32 %v431, %v452
    %v466 = vadd.f32 %v436, %v452
    %v467 = vadd.f32 %v441, %v452
    %v468 = vadd.f32 %v446, %v452
    %v469 = vmul.f32 %v453, 0.5
    %v470 = vmul.f32 %v454, 0.5
    %v471 = vmul.f32 %v455, 0.5
    %v472 = vmul.f32 %v456, 0.5
    %v473 = vmul.f32 %v457, 0.5
    %v474 = vmul.f32 %v458, 0.5
    %v475 = vmul.f32 %v459, 0.5
    %v476 = vmul.f32 %v460, 0.5
    %v477 = vmul.f32 %v461, 0.5
    %v478 = vmul.f32 %v462, 0.5
    %v479 = vmul.f32 %v463, 0.5
    %v480 = vmul.f32 %v464, 0.5
    %v481 = vmul.f32 %v465, 0.5
    %v482 = vmul.f32 %v466, 0.5
    %v483 = vmul.f32 %v467, 0.5
    %v484 = vmul.f32 %v468, 0.5
    %v485 = vmul.f32 %v453, 0.70710677
    %v486 = vmul.f32 %v454, 0.70710677
    %v487 = vmul.f32 %v455, 0.70710677
    %v488 = vmul.f32 %v456, 0.70710677
    %v489 = vmul.f32 %v457, 0.70710677
    %v490 = vmul.f32 %v458, 0.70710677
    %v491 = vmul.f32 %v459, 0.70710677
    %v492 = vmul.f32 %v460, 0.70710677
    %v493 = vmul.f32 %v461, 0.70710677
    %v494 = vmul.f32 %v462, 0.70710677
    %v495 = vmul.f32 %v463, 0.70710677
    %v496 = vmul.f32 %v464, 0.70710677
    %v497 = vmul.f32 %v465, 0.70710677
    %v498 = vmul.f32 %v466, 0.70710677
    %v499 = vmul.f32 %v467, 0.70710677
    %v500 = vmul.f32 %v468, 0.70710677
    %v501 = verf.f32.pop %v485
    %v502 = verf.f32.pop %v486
    %v503 = verf.f32.pop %v487
    %v504 = verf.f32.pop %v488
    %v505 = verf.f32.pop %v489
    %v506 = verf.f32.pop %v490
    %v507 = verf.f32.pop %v491
    %v508 = verf.f32.pop %v492
    %v509 = verf.f32.pop %v493
    %v510 = verf.f32.pop %v494
    %v511 = verf.f32.pop %v495
    %v512 = verf.f32.pop %v496
    %v513 = verf.f32.pop %v497
    %v514 = verf.f32.pop %v498
    %v515 = verf.f32.pop %v499
    %v516 = verf.f32.pop %v500
    %v517 = vadd.f32 %v501, 1.0
    %v518 = vadd.f32 %v502, 1.0
    %v519 = vadd.f32 %v503, 1.0
    %v520 = vadd.f32 %v504, 1.0
    %v521 = vadd.f32 %v505, 1.0
    %v522 = vadd.f32 %v506, 1.0
    %v523 = vadd.f32 %v507, 1.0
    %v524 = vadd.f32 %v508, 1.0
    %v525 = vadd.f32 %v509, 1.0
    %v526 = vadd.f32 %v510, 1.0
    %v527 = vadd.f32 %v511, 1.0
    %v528 = vadd.f32 %v512, 1.0
    %v529 = vadd.f32 %v513, 1.0
    %v530 = vadd.f32 %v514, 1.0
    %v531 = vadd.f32 %v515, 1.0
    %v532 = vadd.f32 %v516, 1.0
    %v533 = vmul.f32 %v469, %v517
    %v534 = vmul.f32 %v470, %v518
    %v535 = vmul.f32 %v471, %v519
    %v536 = vmul.f32 %v472, %v520
    %v537 = vmul.f32 %v473, %v521
    %v538 = vmul.f32 %v474, %v522
    %v539 = vmul.f32 %v475, %v523
    %v540 = vmul.f32 %v476, %v524
    %v541 = vmul.f32 %v477, %v525
    %v542 = vmul.f32 %v478, %v526
    %v543 = vmul.f32 %v479, %v527
    %v544 = vmul.f32 %v480, %v528
    %v545 = vmul.f32 %v481, %v529
    %v546 = vmul.f32 %v482, %v530
    %v547 = vmul.f32 %v483, %v531
    %v548 = vmul.f32 %v484, %v532
    %v550 = vrot.slane %v21, 1
    %vm551 = vcmask 523264
    %v552 = vsel %vm551, %v550, 0
    %v555 = vsel %vm551, %v533, 0
    %v558 = vsel %vm551, %v534, 0
    %v561 = vsel %vm551, %v535, 0
    %v564 = vsel %vm551, %v536, 0
    %v567 = vsel %vm551, %v537, 0
    %v570 = vsel %vm551, %v538, 0
    %v573 = vsel %vm551, %v539, 0
    %v576 = vsel %vm551, %v540, 0
    %v579 = vsel %vm551, %v541, 0
    %v582 = vsel %vm551, %v542, 0
    %v585 = vsel %vm551, %v543, 0
    %v588 = vsel %vm551, %v544, 0
    %v591 = vsel %vm551, %v545, 0
    %v594 = vsel %vm551, %v546, 0
    %v597 = vsel %vm551, %v547, 0
    %v600 = vsel %vm551, %v548, 0
    %602 = vmatprep.subr.mxu0 0.0
    %603 = vmatpush1.xpose.msra.mxu0 %v555
    %604 = vmatprep.subr.mxu0 0.0
    %605 = vmatpush1.xpose.msra.mxu0 %v558
    %606 = vmatprep.subr.mxu0 0.0
    %607 = vmatpush1.xpose.msra.mxu0 %v561
    %608 = vmatprep.subr.mxu0 0.0
    %609 = vmatpush1.xpose.msra.mxu0 %v564
    %610 = vmatprep.subr.mxu0 0.0
    %611 = vmatpush1.xpose.msra.mxu0 %v567
    %612 = vmatprep.subr.mxu0 0.0
    %613 = vmatpush1.xpose.msra.mxu0 %v570
    %614 = vmatprep.subr.mxu0 0.0
    %615 = vmatpush1.xpose.msra.mxu0 %v573
    %616 = vmatprep.subr.mxu0 0.0
    %617 = vmatpush1.xpose.msra.mxu0 %v576
    %618 = vmatprep.subr.mxu0 0.0
    %619 = vmatpush1.xpose.msra.mxu0 %v579
    %620 = vmatprep.subr.mxu0 0.0
    %621 = vmatpush1.xpose.msra.mxu0 %v582
    %622 = vmatprep.subr.mxu0 0.0
    %623 = vmatpush1.xpose.msra.mxu0 %v585
    %624 = vmatprep.subr.mxu0 0.0
    %625 = vmatpush1.xpose.msra.mxu0 %v588
    %626 = vmatprep.subr.mxu0 0.0
    %627 = vmatpush1.xpose.msra.mxu0 %v591
    %628 = vmatprep.subr.mxu0 0.0
    %629 = vmatpush1.xpose.msra.mxu0 %v594
    %630 = vmatprep.subr.mxu0 0.0
    %631 = vmatpush1.xpose.msra.mxu0 %v597
    %632 = vmatprep.subr.mxu0 0.0
    %633 = vmatpush1.xpose.msra.mxu0 %v600
    %634 = vmatprep.subr.mxu0 0.0
    %635 = vmatpush1.xpose.msra.mxu0 0.0
    %636 = vmatprep.subr.mxu0 0.0
    %637 = vmatpush1.xpose.msra.mxu0 0.0
    %638 = vmatprep.subr.mxu0 0.0
    %639 = vmatpush1.xpose.msra.mxu0 0.0
    %640 = vmatprep.subr.mxu0 0.0
    %641 = vmatpush1.xpose.msra.mxu0 0.0
    %642 = vmatprep.subr.mxu0 0.0
    %643 = vmatpush1.xpose.msra.mxu0 0.0
    %644 = vmatprep.subr.mxu0 0.0
    %645 = vmatpush1.xpose.msra.mxu0 0.0
    %646 = vmatprep.subr.mxu0 0.0
    %647 = vmatpush1.xpose.msra.mxu0 0.0
    %648 = vmatprep.subr.mxu0 0.0
    %649 = vmatpush1.xpose.msra.mxu0 0.0
    %650 = vmatprep.subr.mxu0 0.0
    %651 = vmatpush1.xpose.msra.mxu0 0.0
    %652 = vmatprep.subr.mxu0 0.0
    %653 = vmatpush1.xpose.msra.mxu0 0.0
    %654 = vmatprep.subr.mxu0 0.0
    %655 = vmatpush1.xpose.msra.mxu0 0.0
    %656 = vmatprep.subr.mxu0 0.0
    %657 = vmatpush1.xpose.msra.mxu0 0.0
    %658 = vmatprep.subr.mxu0 0.0
    %659 = vmatpush1.xpose.msra.mxu0 0.0
    %660 = vmatprep.subr.mxu0 0.0
    %661 = vmatpush1.xpose.msra.mxu0 0.0
    %662 = vmatprep.subr.mxu0 0.0
    %663 = vmatpush1.xpose.msra.mxu0 0.0
    %664 = vmatprep.subr.mxu0 0.0
    %665 = vmatpush1.xpose.msra.mxu0 0.0
    %666 = vmatprep.mubr.f32.mxu0 0.0
    %667 = vmatmul.mubr.f32.gmra.mrb[0].mxu0 %v552
    %v668 = vpop.f32.mrb[0].mxu0
    %v669 = vadd.f32 0.0, %v668
    %v670 = vpop.f32.mrb[0].mxu0
    %671 = vdwg.mxu0
    %v672 = vmul.f32 %v533, %v533
    %v673 = vmul.f32 %v534, %v534
    %v674 = vmul.f32 %v535, %v535
    %v675 = vmul.f32 %v536, %v536
    %v676 = vmul.f32 %v537, %v537
    %v677 = vmul.f32 %v538, %v538
    %v678 = vmul.f32 %v539, %v539
    %v679 = vmul.f32 %v540, %v540
    %v680 = vmul.f32 %v541, %v541
    %v681 = vmul.f32 %v542, %v542
    %v682 = vmul.f32 %v543, %v543
    %v683 = vmul.f32 %v544, %v544
    %v684 = vmul.f32 %v545, %v545
    %v685 = vmul.f32 %v546, %v546
    %v686 = vmul.f32 %v547, %v547
    %v687 = vmul.f32 %v548, %v548
    %v689 = vsel %vm551, %v672, 0
    %v692 = vsel %vm551, %v673, 0
    %v695 = vsel %vm551, %v674, 0
    %v698 = vsel %vm551, %v675, 0
    %v701 = vsel %vm551, %v676, 0
    %v704 = vsel %vm551, %v677, 0
    %v707 = vsel %vm551, %v678, 0
    %v710 = vsel %vm551, %v679, 0
    %v713 = vsel %vm551, %v680, 0
    %v716 = vsel %vm551, %v681, 0
    %v719 = vsel %vm551, %v682, 0
    %v722 = vsel %vm551, %v683, 0
    %v725 = vsel %vm551, %v684, 0
    %v728 = vsel %vm551, %v685, 0
    %v731 = vsel %vm551, %v686, 0
    %v734 = vsel %vm551, %v687, 0
    %736 = vmatprep.subr.mxu0 0.0
    %737 = vmatpush1.xpose.msra.mxu0 %v689
    %738 = vmatprep.subr.mxu0 0.0
    %739 = vmatpush1.xpose.msra.mxu0 %v692
    %740 = vmatprep.subr.mxu0 0.0
    %741 = vmatpush1.xpose.msra.mxu0 %v695
    %742 = vmatprep.subr.mxu0 0.0
    %743 = vmatpush1.xpose.msra.mxu0 %v698
    %744 = vmatprep.subr.mxu0 0.0
    %745 = vmatpush1.xpose.msra.mxu0 %v701
    %746 = vmatprep.subr.mxu0 0.0
    %747 = vmatpush1.xpose.msra.mxu0 %v704
    %748 = vmatprep.subr.mxu0 0.0
    %749 = vmatpush1.xpose.msra.mxu0 %v707
    %750 = vmatprep.subr.mxu0 0.0
    %751 = vmatpush1.xpose.msra.mxu0 %v710
    %752 = vmatprep.subr.mxu0 0.0
    %753 = vmatpush1.xpose.msra.mxu0 %v713
    %754 = vmatprep.subr.mxu0 0.0
    %755 = vmatpush1.xpose.msra.mxu0 %v716
    %756 = vmatprep.subr.mxu0 0.0
    %757 = vmatpush1.xpose.msra.mxu0 %v719
    %758 = vmatprep.subr.mxu0 0.0
    %759 = vmatpush1.xpose.msra.mxu0 %v722
    %760 = vmatprep.subr.mxu0 0.0
    %761 = vmatpush1.xpose.msra.mxu0 %v725
    %762 = vmatprep.subr.mxu0 0.0
    %763 = vmatpush1.xpose.msra.mxu0 %v728
    %764 = vmatprep.subr.mxu0 0.0
    %765 = vmatpush1.xpose.msra.mxu0 %v731
    %766 = vmatprep.subr.mxu0 0.0
    %767 = vmatpush1.xpose.msra.mxu0 %v734
    %768 = vmatprep.subr.mxu0 0.0
    %769 = vmatpush1.xpose.msra.mxu0 0.0
    %770 = vmatprep.subr.mxu0 0.0
    %771 = vmatpush1.xpose.msra.mxu0 0.0
    %772 = vmatprep.subr.mxu0 0.0
    %773 = vmatpush1.xpose.msra.mxu0 0.0
    %774 = vmatprep.subr.mxu0 0.0
    %775 = vmatpush1.xpose.msra.mxu0 0.0
    %776 = vmatprep.subr.mxu0 0.0
    %777 = vmatpush1.xpose.msra.mxu0 0.0
    %778 = vmatprep.subr.mxu0 0.0
    %779 = vmatpush1.xpose.msra.mxu0 0.0
    %780 = vmatprep.subr.mxu0 0.0
    %781 = vmatpush1.xpose.msra.mxu0 0.0
    %782 = vmatprep.subr.mxu0 0.0
    %783 = vmatpush1.xpose.msra.mxu0 0.0
    %784 = vmatprep.subr.mxu0 0.0
    %785 = vmatpush1.xpose.msra.mxu0 0.0
    %786 = vmatprep.subr.mxu0 0.0
    %787 = vmatpush1.xpose.msra.mxu0 0.0
    %788 = vmatprep.subr.mxu0 0.0
    %789 = vmatpush1.xpose.msra.mxu0 0.0
    %790 = vmatprep.subr.mxu0 0.0
    %791 = vmatpush1.xpose.msra.mxu0 0.0
    %792 = vmatprep.subr.mxu0 0.0
    %793 = vmatpush1.xpose.msra.mxu0 0.0
    %794 = vmatprep.subr.mxu0 0.0
    %795 = vmatpush1.xpose.msra.mxu0 0.0
    %796 = vmatprep.subr.mxu0 0.0
    %797 = vmatpush1.xpose.msra.mxu0 0.0
    %798 = vmatprep.subr.mxu0 0.0
    %799 = vmatpush1.xpose.msra.mxu0 0.0
    %800 = vmatprep.mubr.f32.mxu0 0.0
    %801 = vmatmul.mubr.f32.gmra.mrb[0].mxu0 %v552
    %v802 = vpop.f32.mrb[0].mxu0
    %v803 = vadd.f32 0.0, %v802
    %v804 = vpop.f32.mrb[0].mxu0
    %805 = vdwg.mxu0
    %v806 = vmul.f32 %v669, 0.015625
    %v807 = vmul.f32 %v803, 0.015625
    %v808 = vmul.f32 %v806, %v806
    %v809 = vsub.f32 %v807, %v808
    %v810 = vadd.f32 %v809, 1e-12
    %v811 = vrsqrt.pop %v810
    %v813 = vrot.slane %v669, 1
    %v815 = vmul.f32 %v811, %v813
    %816 = vst [vmem:[#allocation2] sm:$0x1] %v815
    // Predicated region
    $region22: #{tpu_custom_call.1} parent=1 // pred_check
      _
    $region23: #{tpu_custom_call.1} parent=1 // pred_check_branch
      %818 = sbr.rel (0) target = $region25
    $region24: #{tpu_custom_call.1} parent=1 // pred_region
      %s820 = ssub.s32 16, 16
      %821 = vsyncadd [#allocation3], %s820
      %s823 = sshll.u32 [#allocation2], 4
      %s824 = int_to_ptr.vmem [resolvable:$true] %s823
      %826 = dma.vmem_to_hbm [thread:$0]  %s824, 16, %s5, [#allocation3]
    $region25: #{tpu_custom_call.1} parent=1 // pred_fallthru
      _
    // Predicated region
    $region26: #{tpu_custom_call.1} parent=1 // pred_check
      _
    $region27: #{tpu_custom_call.1} parent=1 // pred_check_branch
      %828 = sbr.rel (0) target = $region29
    $region28: #{tpu_custom_call.1} parent=1 // pred_region
      %829 = dma.done [#allocation3], 16
    $region29: #{tpu_custom_call.1} parent=1 // pred_fallthru
      _
    %830 = vsyncpa [#allocation3], 1

</llo_original>
